<compile_context>
chip_gen: v7x
topology: tpu7x:2x2x1
jax: 0.10.0
libtpu: 0.0.40
codegen_flags: <defaults>
</compile_context>

<pallas_src>
import jax
import jax.numpy as jnp
from jax.experimental import pallas as pl
from jax.experimental.pallas import tpu as pltpu

# ---------------------------------------------------------------------------
# Model configuration (synthetic, deterministic init — no checkpoint load).
# ---------------------------------------------------------------------------
LAYERS = [16, 32, 32]        # feature-extractor widths (Linear + Tanh per pair)
NUM_GAUSSIANS = 4
OUTPUT_DIM = 3
BATCH = 8

MD = NUM_GAUSSIANS * OUTPUT_DIM          # mean-head width (12)
G = NUM_GAUSSIANS                        # logvar / weight head width (4)
HEAD_OUT = MD + 2 * G                    # fused head / output slab width (20)


def _num_feature_layers():
    return len(LAYERS) - 1


def _round_up(a, b):
    return (a + b - 1) // b * b


# ---------------------------------------------------------------------------
# Pallas kernel: MLP hot path + fused head matmul + exp / softmax, one output.
# ---------------------------------------------------------------------------
def mdn_kernel(*refs):
    n_fe = _num_feature_layers()
    # refs: x, [W_i, b_i] * n_fe, W_head(fused), b_head(fused), out
    x_ref = refs[0]
    fe_refs = refs[1:1 + 2 * n_fe]
    wh_ref, bh_ref = refs[1 + 2 * n_fe:3 + 2 * n_fe]
    out_ref = refs[3 + 2 * n_fe]

    # Feature extractor: stack of (Linear -> Tanh), unrolled at trace time.
    h = x_ref[...]                                    # already f32
    for li in range(n_fe):
        w = fe_refs[2 * li][...]
        b = fe_refs[2 * li + 1][...]                  # (1, out) -> broadcasts
        h = jnp.tanh(jnp.dot(h, w, preferred_element_type=jnp.float32) + b)

    # Single fused head matmul: columns = [means(MD) | 0.5*logvar(G) | logits(G)]
    head = jnp.dot(h, wh_ref[...], preferred_element_type=jnp.float32) + bh_ref[...]

    # Column masks (pure elementwise — no unaligned lane slicing/concat needed).
    col = jax.lax.broadcasted_iota(jnp.int32, head.shape, 1)
    is_mean = col < MD
    is_std = (col >= MD) & (col < MD + G)
    is_logit = col >= MD + G

    # stds = exp(logvar / 2): Wv/bv were pre-scaled by 0.5 in the wrapper.
    std_vals = jnp.exp(jnp.where(is_std, head, 0.0))

    # softmax over the logit columns only (masked, numerically stable).
    logits = jnp.where(is_logit, head, -jnp.inf)
    m = jnp.max(logits, axis=-1, keepdims=True)
    e = jnp.exp(logits - m)                           # non-logit cols -> 0
    denom = jnp.sum(e, axis=-1, keepdims=True)
    prob_vals = e * pl.reciprocal(denom, approx=True)  # EUP slot

    # One lane-contiguous full-block store: [means | stds | probs].
    out_ref[...] = jnp.where(is_mean, head,
                             jnp.where(is_std, std_vals, prob_vals))


# ---------------------------------------------------------------------------
# Wrapper: fuses head params, tiles the batch, reshapes to PyTorch shapes.
# ---------------------------------------------------------------------------
def _fuse_params(params):
    """[W_i, b_i]*n_fe + fused head weight/bias (logvar cols pre-scaled by 0.5)."""
    n_fe2 = 2 * _num_feature_layers()
    fe = list(params[:n_fe2])
    wm, bm, wv, bv, ww, bw = params[n_fe2:]
    wh = jnp.concatenate([wm, 0.5 * wv, ww], axis=1)   # (last, MD + 2G)
    bh = jnp.concatenate([bm, 0.5 * bv, bw], axis=1)   # (1, MD + 2G)
    return fe + [wh, bh]


def mdn_forward(x, params, block_b=256):
    batch, in_dim = x.shape
    kparams = _fuse_params(params)

    # Batch tile: >=8 (sublane multiple), capped at block_b; pad batch up.
    tb = min(block_b, _round_up(batch, 8))
    bp = _round_up(batch, tb)
    if bp != batch:
        x = jnp.pad(x, ((0, bp - batch), (0, 0)))
    grid = (bp // tb,)

    x_spec = pl.BlockSpec((tb, in_dim), lambda i: (i, 0))
    # Weights/biases: full-array blocks, constant index -> stay resident in VMEM.
    w_specs = [pl.BlockSpec(p.shape, lambda i: (0, 0)) for p in kparams]
    out_spec = pl.BlockSpec((tb, HEAD_OUT), lambda i: (i, 0))

    out = pl.pallas_call(
        mdn_kernel,
        out_shape=jax.ShapeDtypeStruct((bp, HEAD_OUT), jnp.float32),
        grid=grid,
        in_specs=[x_spec] + w_specs,
        out_specs=out_spec,
        compiler_params=pltpu.CompilerParams(
            dimension_semantics=("parallel",)),     # v7x: shard batch over 2 TCs
    )(x, *kparams)

    out = out[:batch]
    means = out[:, :MD].reshape(batch, NUM_GAUSSIANS, OUTPUT_DIM)   # Normal.loc
    stds = out[:, MD:MD + G].reshape(batch, NUM_GAUSSIANS, 1)       # Normal.scale
    probs = out[:, MD + G:]                                         # Categorical.probs
    return means, stds, probs


# ---------------------------------------------------------------------------
# Deterministic parameter initialization (shapes mirror the nn.Module).
# ---------------------------------------------------------------------------
def init_params(key):
    params = []
    ks = jax.random.split(key, 2 * (_num_feature_layers() + 3))
    ki = 0

    def linear(kw, kb, fan_in, fan_out):
        bound = 1.0 / jnp.sqrt(fan_in)
        w = jax.random.uniform(kw, (fan_in, fan_out), jnp.float32, -bound, bound)
        b = jax.random.uniform(kb, (1, fan_out), jnp.float32, -bound, bound)
        return w, b

    for fin, fout in zip(LAYERS[:-1], LAYERS[1:]):
        w, b = linear(ks[ki], ks[ki + 1], fin, fout); ki += 2
        params.extend([w, b])

    last = LAYERS[-1]
    wm, bm = linear(ks[ki], ks[ki + 1], last, NUM_GAUSSIANS * OUTPUT_DIM); ki += 2
    wv, bv = linear(ks[ki], ks[ki + 1], last, NUM_GAUSSIANS); ki += 2
    ww, bw = linear(ks[ki], ks[ki + 1], last, NUM_GAUSSIANS); ki += 2
    params.extend([wm, bm, wv, bv, ww, bw])
    return params


# ---------------------------------------------------------------------------
# Pure-JAX reference (for a quick sanity check) — uses the raw params.
# ---------------------------------------------------------------------------
def mdn_forward_ref(x, params):
    n_fe = _num_feature_layers()
    h = x.astype(jnp.float32)
    for li in range(n_fe):
        w, b = params[2 * li], params[2 * li + 1]
        h = jnp.tanh(h @ w + b)
    wm, bm, wv, bv, ww, bw = params[2 * n_fe:]
    means = (h @ wm + bm).reshape(-1, NUM_GAUSSIANS, OUTPUT_DIM)
    stds = jnp.exp((h @ wv + bv) / 2.0).reshape(-1, NUM_GAUSSIANS, 1)
    probs = jax.nn.softmax(h @ ww + bw, axis=-1)
    return means, stds, probs


# TODO(synk): loss_func / sample (Normal & Categorical distribution objects)
# have no Pallas equivalent; the kernel returns their parameters instead.
if __name__ == "__main__":
    key = jax.random.PRNGKey(0)
    kx, kp = jax.random.split(key)
    params = init_params(kp)

    # Primary small-shape test (grid of 1 block), plus a tiled/padded run
    # (batch=300 -> tile 256, grid=2, zero-padded rows sliced off).
    for batch in (BATCH, 300):
        x = jax.random.normal(kx, (batch, LAYERS[0]), dtype=jnp.float32)

        means, stds, probs = mdn_forward(x, params)
        jax.block_until_ready((means, stds, probs))

        means_r, stds_r, probs_r = mdn_forward_ref(x, params)
        assert means.shape == (batch, NUM_GAUSSIANS, OUTPUT_DIM)
        assert stds.shape == (batch, NUM_GAUSSIANS, 1)
        assert probs.shape == (batch, NUM_GAUSSIANS)
        assert jnp.allclose(means, means_r, atol=1e-5, rtol=1e-5)
        assert jnp.allclose(stds, stds_r, atol=1e-5, rtol=1e-5)
        # probs use the EUP approx reciprocal for the softmax denominator.
        assert jnp.allclose(probs, probs_r, atol=5e-3, rtol=5e-3)

    print("KERNEL_OK")
</pallas_src>

<mosaic_0001>
module attributes {stable_mosaic.version = 11 : i64} {
  func.func @mdn_kernel(%arg0: i32, %arg1: memref<8x16xf32, #tpu.memory_space<vmem>>, %arg2: memref<16x32xf32, #tpu.memory_space<vmem>>, %arg3: memref<1x32xf32, #tpu.memory_space<vmem>>, %arg4: memref<32x32xf32, #tpu.memory_space<vmem>>, %arg5: memref<1x32xf32, #tpu.memory_space<vmem>>, %arg6: memref<32x20xf32, #tpu.memory_space<vmem>>, %arg7: memref<1x20xf32, #tpu.memory_space<vmem>>, %arg8: memref<8x20xf32, #tpu.memory_space<vmem>>) attributes {dimension_semantics = [#tpu.dimension_semantics<parallel>], iteration_bounds = array<i64: 1>, scalar_prefetch = 0 : i64, scratch_operands = 0 : i64, tpu.core_type = #tpu.core_type<tc>, window_params = [{transform_indices = @transform_0, window_bounds = array<i64: 8, 16>}, {pipeline_mode = #tpu.pipeline_mode<synchronous>, transform_indices = @transform_1, window_bounds = array<i64: 16, 32>}, {pipeline_mode = #tpu.pipeline_mode<synchronous>, transform_indices = @transform_2, window_bounds = array<i64: 1, 32>}, {pipeline_mode = #tpu.pipeline_mode<synchronous>, transform_indices = @transform_3, window_bounds = array<i64: 32, 32>}, {pipeline_mode = #tpu.pipeline_mode<synchronous>, transform_indices = @transform_4, window_bounds = array<i64: 1, 32>}, {pipeline_mode = #tpu.pipeline_mode<synchronous>, transform_indices = @transform_5, window_bounds = array<i64: 32, 20>}, {pipeline_mode = #tpu.pipeline_mode<synchronous>, transform_indices = @transform_6, window_bounds = array<i64: 1, 20>}, {transform_indices = @transform_7, window_bounds = array<i64: 8, 20>}]} {
    %c0 = arith.constant 0 : index
    %c0_0 = arith.constant 0 : index
    %0 = vector.load %arg1[%c0, %c0_0] : memref<8x16xf32, #tpu.memory_space<vmem>>, vector<8x16xf32>
    %c0_1 = arith.constant 0 : index
    %c0_2 = arith.constant 0 : index
    %1 = vector.load %arg2[%c0_1, %c0_2] : memref<16x32xf32, #tpu.memory_space<vmem>>, vector<16x32xf32>
    %c0_3 = arith.constant 0 : index
    %c0_4 = arith.constant 0 : index
    %2 = vector.load %arg3[%c0_3, %c0_4] : memref<1x32xf32, #tpu.memory_space<vmem>>, vector<1x32xf32>
    %cst = arith.constant dense<0.000000e+00> : vector<8x32xf32>
    %3 = tpu.matmul %0, %1, %cst {dimension_numbers = #tpu.dot_dimension_numbers<[1], [0], [0], [1], [0, 0, 1, 1], [], []>} : vector<8x16xf32>, vector<16x32xf32>, vector<8x32xf32> -> vector<8x32xf32>
    %4 = vector.broadcast %2 : vector<1x32xf32> to vector<8x32xf32>
    %5 = arith.addf %3, %4 : vector<8x32xf32>
    %6 = math.tanh %5 : vector<8x32xf32>
    %c0_5 = arith.constant 0 : index
    %c0_6 = arith.constant 0 : index
    %7 = vector.load %arg4[%c0_5, %c0_6] : memref<32x32xf32, #tpu.memory_space<vmem>>, vector<32x32xf32>
    %c0_7 = arith.constant 0 : index
    %c0_8 = arith.constant 0 : index
    %8 = vector.load %arg5[%c0_7, %c0_8] : memref<1x32xf32, #tpu.memory_space<vmem>>, vector<1x32xf32>
    %cst_9 = arith.constant dense<0.000000e+00> : vector<8x32xf32>
    %9 = tpu.matmul %6, %7, %cst_9 {dimension_numbers = #tpu.dot_dimension_numbers<[1], [0], [0], [1], [0, 0, 1, 1], [], []>} : vector<8x32xf32>, vector<32x32xf32>, vector<8x32xf32> -> vector<8x32xf32>
    %10 = vector.broadcast %8 : vector<1x32xf32> to vector<8x32xf32>
    %11 = arith.addf %9, %10 : vector<8x32xf32>
    %12 = math.tanh %11 : vector<8x32xf32>
    %c0_10 = arith.constant 0 : index
    %c0_11 = arith.constant 0 : index
    %13 = vector.load %arg6[%c0_10, %c0_11] : memref<32x20xf32, #tpu.memory_space<vmem>>, vector<32x20xf32>
    %cst_12 = arith.constant dense<0.000000e+00> : vector<8x20xf32>
    %14 = tpu.matmul %12, %13, %cst_12 {dimension_numbers = #tpu.dot_dimension_numbers<[1], [0], [0], [1], [0, 0, 1, 1], [], []>} : vector<8x32xf32>, vector<32x20xf32>, vector<8x20xf32> -> vector<8x20xf32>
    %c0_13 = arith.constant 0 : index
    %c0_14 = arith.constant 0 : index
    %15 = vector.load %arg7[%c0_13, %c0_14] : memref<1x20xf32, #tpu.memory_space<vmem>>, vector<1x20xf32>
    %16 = vector.broadcast %15 : vector<1x20xf32> to vector<8x20xf32>
    %17 = arith.addf %14, %16 : vector<8x20xf32>
    %18 = tpu.iota {dimensions = array<i32: 1>} : vector<8x20xi32>
    %c12_i32 = arith.constant 12 : i32
    %19 = vector.broadcast %c12_i32 : i32 to vector<8x20xi32>
    %20 = arith.cmpi slt, %18, %19 : vector<8x20xi32>
    %c12_i32_15 = arith.constant 12 : i32
    %21 = vector.broadcast %c12_i32_15 : i32 to vector<8x20xi32>
    %22 = arith.cmpi sge, %18, %21 : vector<8x20xi32>
    %c16_i32 = arith.constant 16 : i32
    %23 = vector.broadcast %c16_i32 : i32 to vector<8x20xi32>
    %24 = arith.cmpi slt, %18, %23 : vector<8x20xi32>
    %25 = arith.andi %22, %24 : vector<8x20xi1>
    %c16_i32_16 = arith.constant 16 : i32
    %26 = vector.broadcast %c16_i32_16 : i32 to vector<8x20xi32>
    %27 = arith.cmpi sge, %18, %26 : vector<8x20xi32>
    %cst_17 = arith.constant 0.000000e+00 : f32
    %28 = vector.broadcast %cst_17 : f32 to vector<8x20xf32>
    %29 = arith.select %25, %17, %28 : vector<8x20xi1>, vector<8x20xf32>
    %30 = math.exp %29 : vector<8x20xf32>
    %cst_18 = arith.constant 0xFF800000 : f32
    %31 = vector.broadcast %cst_18 : f32 to vector<8x20xf32>
    %32 = arith.select %27, %17, %31 : vector<8x20xi1>, vector<8x20xf32>
    %cst_19 = arith.constant dense<0xFF800000> : vector<8xf32>
    %33 = vector.multi_reduction <maximumf>, %32, %cst_19 [1] : vector<8x20xf32> to vector<8xf32>
    %34 = vector.shape_cast %33 : vector<8xf32> to vector<8x1xf32>
    %35 = vector.broadcast %34 : vector<8x1xf32> to vector<8x20xf32>
    %36 = arith.subf %32, %35 : vector<8x20xf32>
    %37 = math.exp %36 : vector<8x20xf32>
    %cst_20 = arith.constant dense<0.000000e+00> : vector<8xf32>
    %38 = vector.multi_reduction <add>, %37, %cst_20 [1] : vector<8x20xf32> to vector<8xf32>
    %39 = vector.shape_cast %38 : vector<8xf32> to vector<8x1xf32>
    %40 = tpu.reciprocal %39 {approx = true} : vector<8x1xf32> -> vector<8x1xf32>
    %41 = vector.broadcast %40 : vector<8x1xf32> to vector<8x20xf32>
    %42 = arith.mulf %37, %41 : vector<8x20xf32>
    %43 = arith.select %25, %30, %42 : vector<8x20xi1>, vector<8x20xf32>
    %44 = arith.select %20, %17, %43 : vector<8x20xi1>, vector<8x20xf32>
    %c0_21 = arith.constant 0 : index
    %c0_22 = arith.constant 0 : index
    %45 = vector.load %arg8[%c0_21, %c0_22] : memref<8x20xf32, #tpu.memory_space<vmem>>, vector<8x20xf32>
    tpu.vector_store %arg8[%c0_21, %c0_22], %44 {strides = array<i32>} : memref<8x20xf32, #tpu.memory_space<vmem>>, vector<8x20xf32>,
    return
  }
  func.func @transform_0(%arg0: i32) -> (i32, i32) {
    %c0_i32 = arith.constant 0 : i32
    %c0_i32_0 = arith.constant 0 : i32
    return %arg0, %c0_i32 : i32, i32
  }
  func.func @transform_1(%arg0: i32) -> (i32, i32) {
    %c0_i32 = arith.constant 0 : i32
    %c0_i32_0 = arith.constant 0 : i32
    %c0_i32_1 = arith.constant 0 : i32
    return %c0_i32, %c0_i32_0 : i32, i32
  }
  func.func @transform_2(%arg0: i32) -> (i32, i32) {
    %c0_i32 = arith.constant 0 : i32
    %c0_i32_0 = arith.constant 0 : i32
    %c0_i32_1 = arith.constant 0 : i32
    return %c0_i32, %c0_i32_0 : i32, i32
  }
  func.func @transform_3(%arg0: i32) -> (i32, i32) {
    %c0_i32 = arith.constant 0 : i32
    %c0_i32_0 = arith.constant 0 : i32
    %c0_i32_1 = arith.constant 0 : i32
    return %c0_i32, %c0_i32_0 : i32, i32
  }
  func.func @transform_4(%arg0: i32) -> (i32, i32) {
    %c0_i32 = arith.constant 0 : i32
    %c0_i32_0 = arith.constant 0 : i32
    %c0_i32_1 = arith.constant 0 : i32
    return %c0_i32, %c0_i32_0 : i32, i32
  }
  func.func @transform_5(%arg0: i32) -> (i32, i32) {
    %c0_i32 = arith.constant 0 : i32
    %c0_i32_0 = arith.constant 0 : i32
    %c0_i32_1 = arith.constant 0 : i32
    return %c0_i32, %c0_i32_0 : i32, i32
  }
  func.func @transform_6(%arg0: i32) -> (i32, i32) {
    %c0_i32 = arith.constant 0 : i32
    %c0_i32_0 = arith.constant 0 : i32
    %c0_i32_1 = arith.constant 0 : i32
    return %c0_i32, %c0_i32_0 : i32, i32
  }
  func.func @transform_7(%arg0: i32) -> (i32, i32) {
    %c0_i32 = arith.constant 0 : i32
    %c0_i32_0 = arith.constant 0 : i32
    return %arg0, %c0_i32 : i32, i32
  }
}

</mosaic_0001>

<llo_original>
// kernel: tpu_custom_call.1
$region0: #{tpu_custom_call.1}
  #allocation0 [shape = 'u32[]', space=smem, size = 0x4, offset = 0x4, fixed_abs, tag = 'smem constant byte address 0x4 - core index']
  #allocation1 [shape = 'u32[144,128]{1,0:T(1,128)}', space=vmem, size = 0x12000, scoped, tag = 'internal scratch']
  %s0 = inlined_call_operand.vmem [shape: f32[8,16], index: 0, kind: input, shape index: {}]
  %s1 = inlined_call_operand.vmem [shape: f32[16,32], index: 1, kind: input, shape index: {}]
  %s2 = inlined_call_operand.vmem [shape: f32[1,32], index: 2, kind: input, shape index: {}]
  %s3 = inlined_call_operand.vmem [shape: f32[32,32], index: 3, kind: input, shape index: {}]
  %s4 = inlined_call_operand.vmem [shape: f32[1,32], index: 4, kind: input, shape index: {}]
  %s5 = inlined_call_operand.vmem [shape: f32[32,20], index: 5, kind: input, shape index: {}]
  %s6 = inlined_call_operand.vmem [shape: f32[1,20], index: 6, kind: input, shape index: {}]
  %s7 = inlined_call_operand.hbm [shape: f32[8,20], index: 7, kind: output, shape index: {}]
  %s8 = sld [smem:[#allocation0]]
  $region38: #{tpu_custom_call.1} parent=0
    _
  %s10 = ssub.s32 1, %s8
  %s11 = scalar_select 0, %s10, %s8
  $region1: #{tpu_custom_call.1} parent=0
    #allocation2 [shape = 'u8[4096]{0}', space=vmem, size = 0x1000, scoped, tag = 'output window, operand 0, single buffered']
    #allocation3 [shape = 's32[1]{0}', space=sflag, size = 0x4, scoped, tag = 'scoped memory for tpu_custom_call.1']
    %12 = vsyncpa [#allocation3], 0
    // Predicated region
    $region2: #{tpu_custom_call.1} parent=1 // pred_check
      _
    $region3: #{tpu_custom_call.1} parent=1 // pred_check_branch
      %14 = sbr.rel (0) target = $region5
    $region4: #{tpu_custom_call.1} parent=1 // pred_region
      _
    $region5: #{tpu_custom_call.1} parent=1 // pred_fallthru
      _
    // Predicated region
    $region6: #{tpu_custom_call.1} parent=1 // pred_check
      _
    $region7: #{tpu_custom_call.1} parent=1 // pred_check_branch
      %16 = sbr.rel (0) target = $region9
    $region8: #{tpu_custom_call.1} parent=1 // pred_region
      _
    $region9: #{tpu_custom_call.1} parent=1 // pred_fallthru
      _
    // Predicated region
    $region10: #{tpu_custom_call.1} parent=1 // pred_check
      _
    $region11: #{tpu_custom_call.1} parent=1 // pred_check_branch
      %18 = sbr.rel (0) target = $region13
    $region12: #{tpu_custom_call.1} parent=1 // pred_region
      _
    $region13: #{tpu_custom_call.1} parent=1 // pred_fallthru
      _
    // Predicated region
    $region14: #{tpu_custom_call.1} parent=1 // pred_check
      _
    $region15: #{tpu_custom_call.1} parent=1 // pred_check_branch
      %20 = sbr.rel (0) target = $region17
    $region16: #{tpu_custom_call.1} parent=1 // pred_region
      _
    $region17: #{tpu_custom_call.1} parent=1 // pred_fallthru
      _
    // Predicated region
    $region18: #{tpu_custom_call.1} parent=1 // pred_check
      _
    $region19: #{tpu_custom_call.1} parent=1 // pred_check_branch
      %22 = sbr.rel (0) target = $region21
    $region20: #{tpu_custom_call.1} parent=1 // pred_region
      _
    $region21: #{tpu_custom_call.1} parent=1 // pred_fallthru
      _
    // Predicated region
    $region22: #{tpu_custom_call.1} parent=1 // pred_check
      _
    $region23: #{tpu_custom_call.1} parent=1 // pred_check_branch
      %24 = sbr.rel (0) target = $region25
    $region24: #{tpu_custom_call.1} parent=1 // pred_region
      _
    $region25: #{tpu_custom_call.1} parent=1 // pred_fallthru
      _
    // Predicated region
    $region26: #{tpu_custom_call.1} parent=1 // pred_check
      _
    $region27: #{tpu_custom_call.1} parent=1 // pred_check_branch
      %26 = sbr.rel (0) target = $region29
    $region28: #{tpu_custom_call.1} parent=1 // pred_region
      _
    $region29: #{tpu_custom_call.1} parent=1 // pred_fallthru
      _
    %v27 = vld [vmem:[%s0] sm:$0xff]
    %v28 = vld [vmem:[%s1] sm:$0xff]
    %v29 = vld [vmem:[%s1 + $0x8] sm:$0xff]
    %v30 = vld [vmem:[%s2] sm:$0x1]
    %v32 = vlaneseq
    %v33 = vshrl.u32 %v32, 7
    %v34 = vsub.s32 0, %v33
    %v35 = vrot.slane %v30, %v34
    %vm37 = vcmask 130048
    %v39 = vsel %vm37, %v27, 0
    %41 = vmatprep.subr.mxu0 0.0
    %42 = vmatpush1.msra.mxu0 %v28
    %43 = vmatprep.subr.mxu0 0.0
    %44 = vmatpush1.msra.mxu0 %v29
    %45 = vmatprep.subr.mxu0 0.0
    %46 = vmatpush1.msra.mxu0 0.0
    %47 = vmatprep.subr.mxu0 0.0
    %48 = vmatpush1.msra.mxu0 0.0
    %49 = vmatprep.subr.mxu0 0.0
    %50 = vmatpush1.msra.mxu0 0.0
    %51 = vmatprep.subr.mxu0 0.0
    %52 = vmatpush1.msra.mxu0 0.0
    %53 = vmatprep.subr.mxu0 0.0
    %54 = vmatpush1.msra.mxu0 0.0
    %55 = vmatprep.subr.mxu0 0.0
    %56 = vmatpush1.msra.mxu0 0.0
    %57 = vmatprep.subr.mxu0 0.0
    %58 = vmatpush1.msra.mxu0 0.0
    %59 = vmatprep.subr.mxu0 0.0
    %60 = vmatpush1.msra.mxu0 0.0
    %61 = vmatprep.subr.mxu0 0.0
    %62 = vmatpush1.msra.mxu0 0.0
    %63 = vmatprep.subr.mxu0 0.0
    %64 = vmatpush1.msra.mxu0 0.0
    %65 = vmatprep.subr.mxu0 0.0
    %66 = vmatpush1.msra.mxu0 0.0
    %67 = vmatprep.subr.mxu0 0.0
    %68 = vmatpush1.msra.mxu0 0.0
    %69 = vmatprep.subr.mxu0 0.0
    %70 = vmatpush1.msra.mxu0 0.0
    %71 = vmatprep.subr.mxu0 0.0
    %72 = vmatpush1.msra.mxu0 0.0
    %73 = vmatprep.subr.mxu0 0.0
    %74 = vmatpush1.msra.mxu0 0.0
    %75 = vmatprep.subr.mxu0 0.0
    %76 = vmatpush1.msra.mxu0 0.0
    %77 = vmatprep.subr.mxu0 0.0
    %78 = vmatpush1.msra.mxu0 0.0
    %79 = vmatprep.subr.mxu0 0.0
    %80 = vmatpush1.msra.mxu0 0.0
    %81 = vmatprep.subr.mxu0 0.0
    %82 = vmatpush1.msra.mxu0 0.0
    %83 = vmatprep.subr.mxu0 0.0
    %84 = vmatpush1.msra.mxu0 0.0
    %85 = vmatprep.subr.mxu0 0.0
    %86 = vmatpush1.msra.mxu0 0.0
    %87 = vmatprep.subr.mxu0 0.0
    %88 = vmatpush1.msra.mxu0 0.0
    %89 = vmatprep.subr.mxu0 0.0
    %90 = vmatpush1.msra.mxu0 0.0
    %91 = vmatprep.subr.mxu0 0.0
    %92 = vmatpush1.msra.mxu0 0.0
    %93 = vmatprep.subr.mxu0 0.0
    %94 = vmatpush1.msra.mxu0 0.0
    %95 = vmatprep.subr.mxu0 0.0
    %96 = vmatpush1.msra.mxu0 0.0
    %97 = vmatprep.subr.mxu0 0.0
    %98 = vmatpush1.msra.mxu0 0.0
    %99 = vmatprep.subr.mxu0 0.0
    %100 = vmatpush1.msra.mxu0 0.0
    %101 = vmatprep.subr.mxu0 0.0
    %102 = vmatpush1.msra.mxu0 0.0
    %103 = vmatprep.subr.mxu0 0.0
    %104 = vmatpush1.msra.mxu0 0.0
    %105 = vmatprep.mubr.f32.mxu0 0.0
    %106 = vmatmul.mubr.f32.gmra.mrb[0].mxu0 %v39
    %v107 = vpop.f32.mrb[0].mxu0
    %v108 = vadd.f32 %v35, %v107
    %v109 = vpop.f32.mrb[0].mxu0
    %110 = vdwg.mxu0
    %v111 = vtanh.pop %v108
    %v112 = vld [vmem:[%s3] sm:$0xff]
    %v113 = vld [vmem:[%s3 + $0x8] sm:$0xff]
    %v114 = vld [vmem:[%s3 + $0x10] sm:$0xff]
    %v115 = vld [vmem:[%s3 + $0x18] sm:$0xff]
    %v116 = vld [vmem:[%s4] sm:$0x1]
    %v118 = vlaneseq
    %v119 = vshrl.u32 %v118, 7
    %v120 = vsub.s32 0, %v119
    %v121 = vrot.slane %v116, %v120
    %vm123 = vcmask 261120
    %v125 = vsel %vm123, %v111, 0
    %127 = vmatprep.subr.mxu0 0.0
    %128 = vmatpush1.msra.mxu0 %v112
    %129 = vmatprep.subr.mxu0 0.0
    %130 = vmatpush1.msra.mxu0 %v113
    %131 = vmatprep.subr.mxu0 0.0
    %132 = vmatpush1.msra.mxu0 %v114
    %133 = vmatprep.subr.mxu0 0.0
    %134 = vmatpush1.msra.mxu0 %v115
    %135 = vmatprep.subr.mxu0 0.0
    %136 = vmatpush1.msra.mxu0 0.0
    %137 = vmatprep.subr.mxu0 0.0
    %138 = vmatpush1.msra.mxu0 0.0
    %139 = vmatprep.subr.mxu0 0.0
    %140 = vmatpush1.msra.mxu0 0.0
    %141 = vmatprep.subr.mxu0 0.0
    %142 = vmatpush1.msra.mxu0 0.0
    %143 = vmatprep.subr.mxu0 0.0
    %144 = vmatpush1.msra.mxu0 0.0
    %145 = vmatprep.subr.mxu0 0.0
    %146 = vmatpush1.msra.mxu0 0.0
    %147 = vmatprep.subr.mxu0 0.0
    %148 = vmatpush1.msra.mxu0 0.0
    %149 = vmatprep.subr.mxu0 0.0
    %150 = vmatpush1.msra.mxu0 0.0
    %151 = vmatprep.subr.mxu0 0.0
    %152 = vmatpush1.msra.mxu0 0.0
    %153 = vmatprep.subr.mxu0 0.0
    %154 = vmatpush1.msra.mxu0 0.0
    %155 = vmatprep.subr.mxu0 0.0
    %156 = vmatpush1.msra.mxu0 0.0
    %157 = vmatprep.subr.mxu0 0.0
    %158 = vmatpush1.msra.mxu0 0.0
    %159 = vmatprep.subr.mxu0 0.0
    %160 = vmatpush1.msra.mxu0 0.0
    %161 = vmatprep.subr.mxu0 0.0
    %162 = vmatpush1.msra.mxu0 0.0
    %163 = vmatprep.subr.mxu0 0.0
    %164 = vmatpush1.msra.mxu0 0.0
    %165 = vmatprep.subr.mxu0 0.0
    %166 = vmatpush1.msra.mxu0 0.0
    %167 = vmatprep.subr.mxu0 0.0
    %168 = vmatpush1.msra.mxu0 0.0
    %169 = vmatprep.subr.mxu0 0.0
    %170 = vmatpush1.msra.mxu0 0.0
    %171 = vmatprep.subr.mxu0 0.0
    %172 = vmatpush1.msra.mxu0 0.0
    %173 = vmatprep.subr.mxu0 0.0
    %174 = vmatpush1.msra.mxu0 0.0
    %175 = vmatprep.subr.mxu0 0.0
    %176 = vmatpush1.msra.mxu0 0.0
    %177 = vmatprep.subr.mxu0 0.0
    %178 = vmatpush1.msra.mxu0 0.0
    %179 = vmatprep.subr.mxu0 0.0
    %180 = vmatpush1.msra.mxu0 0.0
    %181 = vmatprep.subr.mxu0 0.0
    %182 = vmatpush1.msra.mxu0 0.0
    %183 = vmatprep.subr.mxu0 0.0
    %184 = vmatpush1.msra.mxu0 0.0
    %185 = vmatprep.subr.mxu0 0.0
    %186 = vmatpush1.msra.mxu0 0.0
    %187 = vmatprep.subr.mxu0 0.0
    %188 = vmatpush1.msra.mxu0 0.0
    %189 = vmatprep.subr.mxu0 0.0
    %190 = vmatpush1.msra.mxu0 0.0
    %191 = vmatprep.mubr.f32.mxu0 0.0
    %192 = vmatmul.mubr.f32.gmra.mrb[0].mxu0 %v125
    %v193 = vpop.f32.mrb[0].mxu0
    %v194 = vadd.f32 %v121, %v193
    %v195 = vpop.f32.mrb[0].mxu0
    %196 = vdwg.mxu0
    %v197 = vtanh.pop %v194
    %v198 = vld [vmem:[%s5] sm:$0xff]
    %v199 = vld [vmem:[%s5 + $0x8] sm:$0xff]
    %v200 = vld [vmem:[%s5 + $0x10] sm:$0xff]
    %v201 = vld [vmem:[%s5 + $0x18] sm:$0xff]
    %v202 = vld [vmem:[%s6] sm:$0x1]
    %v204 = vlaneseq
    %v205 = vshrl.u32 %v204, 7
    %v206 = vsub.s32 0, %v205
    %v207 = vrot.slane %v202, %v206
    %v210 = vsel %vm123, %v197, 0
    %212 = vmatprep.subr.mxu0 0.0
    %213 = vmatpush1.msra.mxu0 %v198
    %214 = vmatprep.subr.mxu0 0.0
    %215 = vmatpush1.msra.mxu0 %v199
    %216 = vmatprep.subr.mxu0 0.0
    %217 = vmatpush1.msra.mxu0 %v200
    %218 = vmatprep.subr.mxu0 0.0
    %219 = vmatpush1.msra.mxu0 %v201
    %220 = vmatprep.subr.mxu0 0.0
    %221 = vmatpush1.msra.mxu0 0.0
    %222 = vmatprep.subr.mxu0 0.0
    %223 = vmatpush1.msra.mxu0 0.0
    %224 = vmatprep.subr.mxu0 0.0
    %225 = vmatpush1.msra.mxu0 0.0
    %226 = vmatprep.subr.mxu0 0.0
    %227 = vmatpush1.msra.mxu0 0.0
    %228 = vmatprep.subr.mxu0 0.0
    %229 = vmatpush1.msra.mxu0 0.0
    %230 = vmatprep.subr.mxu0 0.0
    %231 = vmatpush1.msra.mxu0 0.0
    %232 = vmatprep.subr.mxu0 0.0
    %233 = vmatpush1.msra.mxu0 0.0
    %234 = vmatprep.subr.mxu0 0.0
    %235 = vmatpush1.msra.mxu0 0.0
    %236 = vmatprep.subr.mxu0 0.0
    %237 = vmatpush1.msra.mxu0 0.0
    %238 = vmatprep.subr.mxu0 0.0
    %239 = vmatpush1.msra.mxu0 0.0
    %240 = vmatprep.subr.mxu0 0.0
    %241 = vmatpush1.msra.mxu0 0.0
    %242 = vmatprep.subr.mxu0 0.0
    %243 = vmatpush1.msra.mxu0 0.0
    %244 = vmatprep.subr.mxu0 0.0
    %245 = vmatpush1.msra.mxu0 0.0
    %246 = vmatprep.subr.mxu0 0.0
    %247 = vmatpush1.msra.mxu0 0.0
    %248 = vmatprep.subr.mxu0 0.0
    %249 = vmatpush1.msra.mxu0 0.0
    %250 = vmatprep.subr.mxu0 0.0
    %251 = vmatpush1.msra.mxu0 0.0
    %252 = vmatprep.subr.mxu0 0.0
    %253 = vmatpush1.msra.mxu0 0.0
    %254 = vmatprep.subr.mxu0 0.0
    %255 = vmatpush1.msra.mxu0 0.0
    %256 = vmatprep.subr.mxu0 0.0
    %257 = vmatpush1.msra.mxu0 0.0
    %258 = vmatprep.subr.mxu0 0.0
    %259 = vmatpush1.msra.mxu0 0.0
    %260 = vmatprep.subr.mxu0 0.0
    %261 = vmatpush1.msra.mxu0 0.0
    %262 = vmatprep.subr.mxu0 0.0
    %263 = vmatpush1.msra.mxu0 0.0
    %264 = vmatprep.subr.mxu0 0.0
    %265 = vmatpush1.msra.mxu0 0.0
    %266 = vmatprep.subr.mxu0 0.0
    %267 = vmatpush1.msra.mxu0 0.0
    %268 = vmatprep.subr.mxu0 0.0
    %269 = vmatpush1.msra.mxu0 0.0
    %270 = vmatprep.subr.mxu0 0.0
    %271 = vmatpush1.msra.mxu0 0.0
    %272 = vmatprep.subr.mxu0 0.0
    %273 = vmatpush1.msra.mxu0 0.0
    %274 = vmatprep.subr.mxu0 0.0
    %275 = vmatpush1.msra.mxu0 0.0
    %276 = vmatprep.mubr.f32.mxu0 0.0
    %277 = vmatmul.mubr.f32.gmra.mrb[0].mxu0 %v210
    %v278 = vpop.f32.mrb[0].mxu0
    %v279 = vadd.f32 %v207, %v278
    %v280 = vpop.f32.mrb[0].mxu0
    %281 = vdwg.mxu0
    %v282 = vlaneseq
    %v283 = vand.u32 %v282, 127
    %vm284 = vcmp.lt.s32.totalorder %v283, 12
    %vm285 = vcmp.ge.s32.totalorder %v283, 12
    %vm286 = vcmp.lt.s32.totalorder %v283, 16
    %vm287 = vmand %vm285, %vm286
    %vm288 = vcmp.ge.s32.totalorder %v283, 16
    %v289 = vsel %vm287, %v279, 0.0
    %v290 = vmul.f32 %v289, 1.442695
    %v291 = vpow.pop %v290
    %v292 = vsel %vm288, %v279, -inf
    %vm293 = vcmask 162816
    %v294 = vsel %vm293, %v292, -inf
    %295 = vmax.xlane.f32.xlu0 %v294
    %v296 = vpop.xlane.xlu0 %295
    %v297 = vsub.f32 %v292, %v296
    %v298 = vmul.f32 %v297, 1.442695
    %v299 = vpow.pop %v298
    %v300 = vsel %vm293, %v299, 0.0
    %301 = vadd.xlane.f32.xlu0 %v300
    %v302 = vpop.xlane.xlu0 %301
    %v303 = vrcp.pop %v302
    %v304 = vmul.f32 %v299, %v303
    %v305 = vsel %vm287, %v291, %v304
    %v306 = vsel %vm284, %v279, %v305
    %307 = vst.msk [vmem:[#allocation2] sm:$0xff] %vm293, %v306
    // Predicated region
    $region30: #{tpu_custom_call.1} parent=1 // pred_check
      _
    $region31: #{tpu_custom_call.1} parent=1 // pred_check_branch
      %309 = sbr.rel (0) target = $region33
    $region32: #{tpu_custom_call.1} parent=1 // pred_region
      %s311 = ssub.s32 128, 128
      %312 = vsyncadd [#allocation3], %s311
      %s314 = sshll.u32 [#allocation2], 4
      %s315 = int_to_ptr.vmem [resolvable:$true] %s314
      %317 = dma.vmem_to_hbm [thread:$0]  %s315, 128, %s7, [#allocation3]
    $region33: #{tpu_custom_call.1} parent=1 // pred_fallthru
      _
    // Predicated region
    $region34: #{tpu_custom_call.1} parent=1 // pred_check
      _
    $region35: #{tpu_custom_call.1} parent=1 // pred_check_branch
      %319 = sbr.rel (0) target = $region37
    $region36: #{tpu_custom_call.1} parent=1 // pred_region
      %320 = dma.done [#allocation3], 128
    $region37: #{tpu_custom_call.1} parent=1 // pred_fallthru
      _
    %321 = vsyncpa [#allocation3], 1

</llo_original>
